<compile_context>
chip_gen: v7x
topology: tpu7x:2x2x1
jax: 0.10.0
libtpu: 0.0.40
codegen_flags: <defaults>
</compile_context>

<pallas_src>
import functools

import jax
import jax.numpy as jnp
from jax.experimental import pallas as pl
from jax.experimental.pallas import tpu as pltpu


def _csam_kernel(params_ref, x_ref, o_ref, *, C, H, W, approx_sigmoid):
    # params_ref: SMEM (29,) f32 = [conv_w flattened kd*9+kh*3+kw (27), conv_bias, gamma]
    # x_ref / o_ref: VMEM (RB, L_pad) block = RB/C whole batches of C channel planes,
    #                each plane flattened (h*W + w) into the lane axis.
    RB, L_pad = x_ref.shape
    f32 = jnp.float32
    x = x_ref[...]                                          # (RB, L_pad)

    w = lambda kd, kh, kw: params_ref[kd * 9 + kh * 3 + kw]  # scalar weight taps

    # Boundary masks emulating Conv3d padding=1 (also kill roll wrap-around and any
    # bleed across batch boundaries / into the lane padding).  Built at broadcast
    # shapes so the per-element cost is ~0 instead of ~8 VALU ops per element.
    l_idx = jax.lax.broadcasted_iota(jnp.int32, (1, L_pad), 1)   # flattened h*W + w
    w_idx = l_idx % W
    m_h_m1 = (l_idx >= W).astype(f32)                  # row h-1 exists
    m_h_p1 = (l_idx < (H - 1) * W).astype(f32)         # row h+1 exists
    m_w_m1 = (w_idx >= 1).astype(f32)                  # col w-1 exists (kills row bleed)
    m_w_p1 = (w_idx <= W - 2).astype(f32)              # col w+1 exists (kills row bleed)
    c_idx = jax.lax.broadcasted_iota(jnp.int32, (RB, 1), 0) % C
    m_c_m1 = (c_idx >= 1).astype(f32)                  # plane c-1 exists (same batch)
    m_c_p1 = (c_idx <= C - 2).astype(f32)              # plane c+1 exists (same batch)

    # kh (row) shifts applied ONCE to the input: t[kh][r, l] = x[r, h+kh-1, w].
    t_m1 = pltpu.roll(x, shift=W, axis=1) * m_h_m1
    t_p1 = pltpu.roll(x, shift=L_pad - W, axis=1) * m_h_p1
    t = (t_m1, x, t_p1)

    acc = jnp.full((RB, L_pad), params_ref[27], dtype=f32)       # conv bias
    for kd in range(3):                       # channel offset dc = kd - 1
        q = None
        for kw_ in range(3):                  # column offset dw = kw_ - 1
            # Reduce over kh with plain weighted sums (no shifts inside the loop).
            r = (w(kd, 0, kw_) * t[0]
                 + w(kd, 1, kw_) * t[1]
                 + w(kd, 2, kw_) * t[2])
            if kw_ == 0:      # needs x[..., w-1]
                r = pltpu.roll(r, shift=1, axis=1) * m_w_m1
            elif kw_ == 2:    # needs x[..., w+1]
                r = pltpu.roll(r, shift=L_pad - 1, axis=1) * m_w_p1
            q = r if q is None else q + r
        if kd == 0:           # needs x[c-1, ...]  (sublane roll, masked per batch)
            q = pltpu.roll(q, shift=1, axis=0) * m_c_m1
        elif kd == 2:         # needs x[c+1, ...]
            q = pltpu.roll(q, shift=RB - 1, axis=0) * m_c_p1
        acc = acc + q

    # sigmoid(acc): exp + reciprocal live on the EUP slot, off the VALU path.
    e = jnp.exp(-acc)
    if approx_sigmoid:
        att = pl.reciprocal(1.0 + e, approx=True)
    else:
        att = 1.0 / (1.0 + e)

    gamma = params_ref[28]
    o_ref[...] = (x * (gamma * att) + x).astype(o_ref.dtype)


def _pick_rows_per_block(B, C, L_pad, *, target_block_bytes):
    """Rows per block = (#batches per block) * C, chosen so that:
       - blocks contain whole batches (channel halo never crosses a block),
       - the sublane constraint holds (rows % 8 == 0, or the block spans all rows),
       - the block stays under ~target_block_bytes (bounds VMEM temporaries),
       - when possible there are >= 2 blocks (megacore / v7x 2-TC sharding)."""
    bytes_per_batch = C * L_pad * 4
    divisors = [d for d in range(1, B + 1) if B % d == 0]
    legal = [d for d in divisors if ((d * C) % 8 == 0) or d == B]
    under = [d for d in legal if d * bytes_per_batch <= target_block_bytes]
    if under:
        multi = [d for d in under if (B // d) >= 2]
        nb = max(multi) if multi else max(under)
    else:
        nb = min(legal)            # smallest legal block; vmem limit raised below
    return nb * C


def csam_forward(x, conv_w, conv_b, gamma, *, approx_sigmoid=True,
                 target_block_bytes=512 * 1024):
    """x: (B, C, H, W) f32; conv_w: (1,1,3,3,3); conv_b: (1,); gamma: (1,)."""
    B, C, H, W = x.shape
    L = H * W
    L_pad = ((L + 127) // 128) * 128          # lane-dense stores for any H*W
    params = jnp.concatenate(
        [conv_w.reshape(-1), conv_b.reshape(-1), gamma.reshape(-1)]
    ).astype(jnp.float32)                                   # (29,)

    # Fold batch into the row/sublane axis; flatten (H, W) into the lane axis.
    x_flat = x.reshape(B * C, L)
    if L_pad != L:
        x_flat = jnp.pad(x_flat, ((0, 0), (0, L_pad - L)))

    RB = _pick_rows_per_block(B, C, L_pad, target_block_bytes=target_block_bytes)
    num_blocks = (B * C) // RB
    block_bytes = RB * L_pad * 4
    # 2-deep pipelined in+out buffers plus elementwise temporaries; clamp so the
    # request stays within every generation's physical VMEM (v7x: 64 MiB / TC).
    vmem_limit = int(min(max(12 * block_bytes + (2 << 20), 16 << 20), 40 << 20))

    kernel = functools.partial(
        _csam_kernel, C=C, H=H, W=W, approx_sigmoid=approx_sigmoid)

    out_flat = pl.pallas_call(
        kernel,
        out_shape=jax.ShapeDtypeStruct((B * C, L_pad), x.dtype),
        grid=(num_blocks,),
        in_specs=[
            pl.BlockSpec(memory_space=pltpu.MemorySpace.SMEM),   # params (scalars)
            pl.BlockSpec((RB, L_pad), lambda i: (i, 0)),         # x row block
        ],
        out_specs=pl.BlockSpec((RB, L_pad), lambda i: (i, 0)),
        compiler_params=pltpu.CompilerParams(
            dimension_semantics=("parallel",),
            vmem_limit_bytes=vmem_limit,
        ),
    )(params, x_flat)

    out = out_flat[:, :L] if L_pad != L else out_flat
    return out.reshape(B, C, H, W)


def _reference_forward(x, conv_w, conv_b, gamma):
    """Pure-JAX reference mirroring the PyTorch module."""
    xin = x[:, None]  # (B, 1, C, H, W)
    conv = jax.lax.conv_general_dilated(
        xin, conv_w,
        window_strides=(1, 1, 1),
        padding=((1, 1), (1, 1), (1, 1)),
        dimension_numbers=("NCDHW", "OIDHW", "NCDHW"),
    ) + conv_b.reshape(1, 1, 1, 1, 1)
    out = gamma.reshape(()) * jax.nn.sigmoid(conv)
    out = out.reshape(x.shape)
    return x * out + x


def _run_case(key, B, C, H, W):
    kx, kw = jax.random.split(key)
    x = jax.random.normal(kx, (B, C, H, W), dtype=jnp.float32)
    # Deterministic synthetic parameters (PyTorch inits gamma to 0, which would
    # make the forward a no-op; use non-zero values so the conv path is tested).
    conv_w = 0.1 * jax.random.normal(kw, (1, 1, 3, 3, 3), dtype=jnp.float32)
    conv_b = jnp.array([0.1], dtype=jnp.float32)
    gamma = jnp.array([0.5], dtype=jnp.float32)

    ref = jax.block_until_ready(_reference_forward(x, conv_w, conv_b, gamma))

    # Exact-sigmoid path: tight tolerance (verifies conv/masking/roll structure).
    out_exact = jax.block_until_ready(
        csam_forward(x, conv_w, conv_b, gamma, approx_sigmoid=False))
    assert out_exact.shape == x.shape and out_exact.dtype == x.dtype
    assert jnp.allclose(out_exact, ref, atol=1e-5, rtol=1e-5), (
        f"exact path ({B},{C},{H},{W}) max abs err "
        f"{jnp.max(jnp.abs(out_exact - ref))}")

    # Default fast path (EUP approximate reciprocal): slightly looser tolerance.
    out = jax.block_until_ready(csam_forward(x, conv_w, conv_b, gamma))
    assert out.shape == x.shape and out.dtype == x.dtype
    assert jnp.allclose(out, ref, atol=2e-3, rtol=2e-3), (
        f"approx path ({B},{C},{H},{W}) max abs err "
        f"{jnp.max(jnp.abs(out - ref))}")


if __name__ == "__main__":
    key = jax.random.PRNGKey(0)
    k0, k1 = jax.random.split(key)
    # Primary small shape from the module spec.
    _run_case(k0, B=2, C=4, H=16, W=16)
    # Non-128-multiple spatial size exercises the lane-padding path.
    _run_case(k1, B=1, C=8, H=7, W=7)
    print("KERNEL_OK")
</pallas_src>

<mosaic_0001>
module attributes {stable_mosaic.version = 11 : i64} {
  func.func @_csam_kernel(%arg0: i32, %arg1: memref<29xf32, #tpu.memory_space<smem>>, %arg2: memref<8x256xf32, #tpu.memory_space<vmem>>, %arg3: memref<8x256xf32, #tpu.memory_space<vmem>>) attributes {dimension_semantics = [#tpu.dimension_semantics<parallel>], iteration_bounds = array<i64: 1>, scalar_prefetch = 0 : i64, scratch_operands = 0 : i64, tpu.core_type = #tpu.core_type<tc>, window_params = [{transform_indices = @transform_0, window_bounds = array<i64: 29>}, {transform_indices = @transform_1, window_bounds = array<i64: 8, 256>}, {transform_indices = @transform_2, window_bounds = array<i64: 8, 256>}]} {
    %c0 = arith.constant 0 : index
    %c0_0 = arith.constant 0 : index
    %0 = vector.load %arg2[%c0, %c0_0] : memref<8x256xf32, #tpu.memory_space<vmem>>, vector<8x256xf32>
    %1 = tpu.iota {dimensions = array<i32: 1>} : vector<1x256xi32>
    %c16_i32 = arith.constant 16 : i32
    %c0_i32 = arith.constant 0 : i32
    %2 = arith.cmpi eq, %c16_i32, %c0_i32 : i32
    %c1_i32 = arith.constant 1 : i32
    %3 = arith.select %2, %c1_i32, %c16_i32 : i32
    %4 = vector.broadcast %3 : i32 to vector<1x256xi32>
    %5 = arith.remsi %1, %4 : vector<1x256xi32>
    %c0_i32_1 = arith.constant 0 : i32
    %6 = vector.broadcast %c0_i32_1 : i32 to vector<1x256xi32>
    %7 = arith.cmpi ne, %5, %6 : vector<1x256xi32>
    %c0_i32_2 = arith.constant 0 : i32
    %8 = vector.broadcast %c0_i32_2 : i32 to vector<1x256xi32>
    %9 = arith.cmpi slt, %5, %8 : vector<1x256xi32>
    %c0_i32_3 = arith.constant 0 : i32
    %10 = arith.cmpi slt, %3, %c0_i32_3 : i32
    %11 = vector.broadcast %10 : i1 to vector<1x256xi1>
    %12 = vector.broadcast %11 : vector<1x256xi1> to vector<1x256xi1>
    %13 = arith.xori %9, %12 : vector<1x256xi1>
    %14 = arith.andi %13, %7 : vector<1x256xi1>
    %15 = vector.broadcast %3 : i32 to vector<1x256xi32>
    %16 = arith.addi %5, %15 : vector<1x256xi32>
    %17 = arith.select %14, %16, %5 : vector<1x256xi1>, vector<1x256xi32>
    %c16_i32_4 = arith.constant 16 : i32
    %18 = vector.broadcast %c16_i32_4 : i32 to vector<1x256xi32>
    %19 = arith.cmpi sge, %1, %18 : vector<1x256xi32>
    %20 = arith.extui %19 : vector<1x256xi1> to vector<1x256xi32>
    %21 = arith.sitofp %20 : vector<1x256xi32> to vector<1x256xf32>
    %c240_i32 = arith.constant 240 : i32
    %22 = vector.broadcast %c240_i32 : i32 to vector<1x256xi32>
    %23 = arith.cmpi slt, %1, %22 : vector<1x256xi32>
    %24 = arith.extui %23 : vector<1x256xi1> to vector<1x256xi32>
    %25 = arith.sitofp %24 : vector<1x256xi32> to vector<1x256xf32>
    %c1_i32_5 = arith.constant 1 : i32
    %26 = vector.broadcast %c1_i32_5 : i32 to vector<1x256xi32>
    %27 = arith.cmpi sge, %17, %26 : vector<1x256xi32>
    %28 = arith.extui %27 : vector<1x256xi1> to vector<1x256xi32>
    %29 = arith.sitofp %28 : vector<1x256xi32> to vector<1x256xf32>
    %c14_i32 = arith.constant 14 : i32
    %30 = vector.broadcast %c14_i32 : i32 to vector<1x256xi32>
    %31 = arith.cmpi sle, %17, %30 : vector<1x256xi32>
    %32 = arith.extui %31 : vector<1x256xi1> to vector<1x256xi32>
    %33 = arith.sitofp %32 : vector<1x256xi32> to vector<1x256xf32>
    %34 = tpu.iota {dimensions = array<i32: 0>} : vector<8x1xi32>
    %c4_i32 = arith.constant 4 : i32
    %c0_i32_6 = arith.constant 0 : i32
    %35 = arith.cmpi eq, %c4_i32, %c0_i32_6 : i32
    %c1_i32_7 = arith.constant 1 : i32
    %36 = arith.select %35, %c1_i32_7, %c4_i32 : i32
    %37 = vector.broadcast %36 : i32 to vector<8x1xi32>
    %38 = arith.remsi %34, %37 : vector<8x1xi32>
    %c0_i32_8 = arith.constant 0 : i32
    %39 = vector.broadcast %c0_i32_8 : i32 to vector<8x1xi32>
    %40 = arith.cmpi ne, %38, %39 : vector<8x1xi32>
    %c0_i32_9 = arith.constant 0 : i32
    %41 = vector.broadcast %c0_i32_9 : i32 to vector<8x1xi32>
    %42 = arith.cmpi slt, %38, %41 : vector<8x1xi32>
    %c0_i32_10 = arith.constant 0 : i32
    %43 = arith.cmpi slt, %36, %c0_i32_10 : i32
    %44 = vector.broadcast %43 : i1 to vector<8x1xi1>
    %45 = vector.broadcast %44 : vector<8x1xi1> to vector<8x1xi1>
    %46 = arith.xori %42, %45 : vector<8x1xi1>
    %47 = arith.andi %46, %40 : vector<8x1xi1>
    %48 = vector.broadcast %36 : i32 to vector<8x1xi32>
    %49 = arith.addi %38, %48 : vector<8x1xi32>
    %50 = arith.select %47, %49, %38 : vector<8x1xi1>, vector<8x1xi32>
    %c1_i32_11 = arith.constant 1 : i32
    %51 = vector.broadcast %c1_i32_11 : i32 to vector<8x1xi32>
    %52 = arith.cmpi sge, %50, %51 : vector<8x1xi32>
    %53 = arith.extui %52 : vector<8x1xi1> to vector<8x1xi32>
    %54 = arith.sitofp %53 : vector<8x1xi32> to vector<8x1xf32>
    %c2_i32 = arith.constant 2 : i32
    %55 = vector.broadcast %c2_i32 : i32 to vector<8x1xi32>
    %56 = arith.cmpi sle, %50, %55 : vector<8x1xi32>
    %57 = arith.extui %56 : vector<8x1xi1> to vector<8x1xi32>
    %58 = arith.sitofp %57 : vector<8x1xi32> to vector<8x1xf32>
    %c16_i32_12 = arith.constant 16 : i32
    %59 = tpu.dynamic_rotate %0 by %c16_i32_12 dim 1 : vector<8x256xf32>, i32 -> vector<8x256xf32>
    %60 = vector.broadcast %21 : vector<1x256xf32> to vector<8x256xf32>
    %61 = arith.mulf %59, %60 : vector<8x256xf32>
    %c240_i32_13 = arith.constant 240 : i32
    %62 = tpu.dynamic_rotate %0 by %c240_i32_13 dim 1 : vector<8x256xf32>, i32 -> vector<8x256xf32>
    %63 = vector.broadcast %25 : vector<1x256xf32> to vector<8x256xf32>
    %64 = arith.mulf %62, %63 : vector<8x256xf32>
    %c27 = arith.constant 27 : index
    %65 = memref.load %arg1[%c27] : memref<29xf32, #tpu.memory_space<smem>>
    %66 = vector.broadcast %65 : f32 to vector<8x256xf32>
    %c0_14 = arith.constant 0 : index
    %67 = memref.load %arg1[%c0_14] : memref<29xf32, #tpu.memory_space<smem>>
    %68 = vector.broadcast %67 : f32 to vector<8x256xf32>
    %69 = arith.mulf %68, %61 : vector<8x256xf32>
    %c3 = arith.constant 3 : index
    %70 = memref.load %arg1[%c3] : memref<29xf32, #tpu.memory_space<smem>>
    %71 = vector.broadcast %70 : f32 to vector<8x256xf32>
    %72 = arith.mulf %71, %0 : vector<8x256xf32>
    %73 = arith.addf %69, %72 : vector<8x256xf32>
    %c6 = arith.constant 6 : index
    %74 = memref.load %arg1[%c6] : memref<29xf32, #tpu.memory_space<smem>>
    %75 = vector.broadcast %74 : f32 to vector<8x256xf32>
    %76 = arith.mulf %75, %64 : vector<8x256xf32>
    %77 = arith.addf %73, %76 : vector<8x256xf32>
    %c1_i32_15 = arith.constant 1 : i32
    %78 = tpu.dynamic_rotate %77 by %c1_i32_15 dim 1 : vector<8x256xf32>, i32 -> vector<8x256xf32>
    %79 = vector.broadcast %29 : vector<1x256xf32> to vector<8x256xf32>
    %80 = arith.mulf %78, %79 : vector<8x256xf32>
    %c1 = arith.constant 1 : index
    %81 = memref.load %arg1[%c1] : memref<29xf32, #tpu.memory_space<smem>>
    %82 = vector.broadcast %81 : f32 to vector<8x256xf32>
    %83 = arith.mulf %82, %61 : vector<8x256xf32>
    %c4 = arith.constant 4 : index
    %84 = memref.load %arg1[%c4] : memref<29xf32, #tpu.memory_space<smem>>
    %85 = vector.broadcast %84 : f32 to vector<8x256xf32>
    %86 = arith.mulf %85, %0 : vector<8x256xf32>
    %87 = arith.addf %83, %86 : vector<8x256xf32>
    %c7 = arith.constant 7 : index
    %88 = memref.load %arg1[%c7] : memref<29xf32, #tpu.memory_space<smem>>
    %89 = vector.broadcast %88 : f32 to vector<8x256xf32>
    %90 = arith.mulf %89, %64 : vector<8x256xf32>
    %91 = arith.addf %87, %90 : vector<8x256xf32>
    %92 = arith.addf %80, %91 : vector<8x256xf32>
    %c2 = arith.constant 2 : index
    %93 = memref.load %arg1[%c2] : memref<29xf32, #tpu.memory_space<smem>>
    %94 = vector.broadcast %93 : f32 to vector<8x256xf32>
    %95 = arith.mulf %94, %61 : vector<8x256xf32>
    %c5 = arith.constant 5 : index
    %96 = memref.load %arg1[%c5] : memref<29xf32, #tpu.memory_space<smem>>
    %97 = vector.broadcast %96 : f32 to vector<8x256xf32>
    %98 = arith.mulf %97, %0 : vector<8x256xf32>
    %99 = arith.addf %95, %98 : vector<8x256xf32>
    %c8 = arith.constant 8 : index
    %100 = memref.load %arg1[%c8] : memref<29xf32, #tpu.memory_space<smem>>
    %101 = vector.broadcast %100 : f32 to vector<8x256xf32>
    %102 = arith.mulf %101, %64 : vector<8x256xf32>
    %103 = arith.addf %99, %102 : vector<8x256xf32>
    %c255_i32 = arith.constant 255 : i32
    %104 = tpu.dynamic_rotate %103 by %c255_i32 dim 1 : vector<8x256xf32>, i32 -> vector<8x256xf32>
    %105 = vector.broadcast %33 : vector<1x256xf32> to vector<8x256xf32>
    %106 = arith.mulf %104, %105 : vector<8x256xf32>
    %107 = arith.addf %92, %106 : vector<8x256xf32>
    %c1_i32_16 = arith.constant 1 : i32
    %108 = tpu.dynamic_rotate %107 by %c1_i32_16 dim 0 : vector<8x256xf32>, i32 -> vector<8x256xf32>
    %109 = vector.broadcast %54 : vector<8x1xf32> to vector<8x256xf32>
    %110 = arith.mulf %108, %109 : vector<8x256xf32>
    %111 = arith.addf %66, %110 : vector<8x256xf32>
    %c9 = arith.constant 9 : index
    %112 = memref.load %arg1[%c9] : memref<29xf32, #tpu.memory_space<smem>>
    %113 = vector.broadcast %112 : f32 to vector<8x256xf32>
    %114 = arith.mulf %113, %61 : vector<8x256xf32>
    %c12 = arith.constant 12 : index
    %115 = memref.load %arg1[%c12] : memref<29xf32, #tpu.memory_space<smem>>
    %116 = vector.broadcast %115 : f32 to vector<8x256xf32>
    %117 = arith.mulf %116, %0 : vector<8x256xf32>
    %118 = arith.addf %114, %117 : vector<8x256xf32>
    %c15 = arith.constant 15 : index
    %119 = memref.load %arg1[%c15] : memref<29xf32, #tpu.memory_space<smem>>
    %120 = vector.broadcast %119 : f32 to vector<8x256xf32>
    %121 = arith.mulf %120, %64 : vector<8x256xf32>
    %122 = arith.addf %118, %121 : vector<8x256xf32>
    %c1_i32_17 = arith.constant 1 : i32
    %123 = tpu.dynamic_rotate %122 by %c1_i32_17 dim 1 : vector<8x256xf32>, i32 -> vector<8x256xf32>
    %124 = vector.broadcast %29 : vector<1x256xf32> to vector<8x256xf32>
    %125 = arith.mulf %123, %124 : vector<8x256xf32>
    %c10 = arith.constant 10 : index
    %126 = memref.load %arg1[%c10] : memref<29xf32, #tpu.memory_space<smem>>
    %127 = vector.broadcast %126 : f32 to vector<8x256xf32>
    %128 = arith.mulf %127, %61 : vector<8x256xf32>
    %c13 = arith.constant 13 : index
    %129 = memref.load %arg1[%c13] : memref<29xf32, #tpu.memory_space<smem>>
    %130 = vector.broadcast %129 : f32 to vector<8x256xf32>
    %131 = arith.mulf %130, %0 : vector<8x256xf32>
    %132 = arith.addf %128, %131 : vector<8x256xf32>
    %c16 = arith.constant 16 : index
    %133 = memref.load %arg1[%c16] : memref<29xf32, #tpu.memory_space<smem>>
    %134 = vector.broadcast %133 : f32 to vector<8x256xf32>
    %135 = arith.mulf %134, %64 : vector<8x256xf32>
    %136 = arith.addf %132, %135 : vector<8x256xf32>
    %137 = arith.addf %125, %136 : vector<8x256xf32>
    %c11 = arith.constant 11 : index
    %138 = memref.load %arg1[%c11] : memref<29xf32, #tpu.memory_space<smem>>
    %139 = vector.broadcast %138 : f32 to vector<8x256xf32>
    %140 = arith.mulf %139, %61 : vector<8x256xf32>
    %c14 = arith.constant 14 : index
    %141 = memref.load %arg1[%c14] : memref<29xf32, #tpu.memory_space<smem>>
    %142 = vector.broadcast %141 : f32 to vector<8x256xf32>
    %143 = arith.mulf %142, %0 : vector<8x256xf32>
    %144 = arith.addf %140, %143 : vector<8x256xf32>
    %c17 = arith.constant 17 : index
    %145 = memref.load %arg1[%c17] : memref<29xf32, #tpu.memory_space<smem>>
    %146 = vector.broadcast %145 : f32 to vector<8x256xf32>
    %147 = arith.mulf %146, %64 : vector<8x256xf32>
    %148 = arith.addf %144, %147 : vector<8x256xf32>
    %c255_i32_18 = arith.constant 255 : i32
    %149 = tpu.dynamic_rotate %148 by %c255_i32_18 dim 1 : vector<8x256xf32>, i32 -> vector<8x256xf32>
    %150 = vector.broadcast %33 : vector<1x256xf32> to vector<8x256xf32>
    %151 = arith.mulf %149, %150 : vector<8x256xf32>
    %152 = arith.addf %137, %151 : vector<8x256xf32>
    %153 = arith.addf %111, %152 : vector<8x256xf32>
    %c18 = arith.constant 18 : index
    %154 = memref.load %arg1[%c18] : memref<29xf32, #tpu.memory_space<smem>>
    %155 = vector.broadcast %154 : f32 to vector<8x256xf32>
    %156 = arith.mulf %155, %61 : vector<8x256xf32>
    %c21 = arith.constant 21 : index
    %157 = memref.load %arg1[%c21] : memref<29xf32, #tpu.memory_space<smem>>
    %158 = vector.broadcast %157 : f32 to vector<8x256xf32>
    %159 = arith.mulf %158, %0 : vector<8x256xf32>
    %160 = arith.addf %156, %159 : vector<8x256xf32>
    %c24 = arith.constant 24 : index
    %161 = memref.load %arg1[%c24] : memref<29xf32, #tpu.memory_space<smem>>
    %162 = vector.broadcast %161 : f32 to vector<8x256xf32>
    %163 = arith.mulf %162, %64 : vector<8x256xf32>
    %164 = arith.addf %160, %163 : vector<8x256xf32>
    %c1_i32_19 = arith.constant 1 : i32
    %165 = tpu.dynamic_rotate %164 by %c1_i32_19 dim 1 : vector<8x256xf32>, i32 -> vector<8x256xf32>
    %166 = vector.broadcast %29 : vector<1x256xf32> to vector<8x256xf32>
    %167 = arith.mulf %165, %166 : vector<8x256xf32>
    %c19 = arith.constant 19 : index
    %168 = memref.load %arg1[%c19] : memref<29xf32, #tpu.memory_space<smem>>
    %169 = vector.broadcast %168 : f32 to vector<8x256xf32>
    %170 = arith.mulf %169, %61 : vector<8x256xf32>
    %c22 = arith.constant 22 : index
    %171 = memref.load %arg1[%c22] : memref<29xf32, #tpu.memory_space<smem>>
    %172 = vector.broadcast %171 : f32 to vector<8x256xf32>
    %173 = arith.mulf %172, %0 : vector<8x256xf32>
    %174 = arith.addf %170, %173 : vector<8x256xf32>
    %c25 = arith.constant 25 : index
    %175 = memref.load %arg1[%c25] : memref<29xf32, #tpu.memory_space<smem>>
    %176 = vector.broadcast %175 : f32 to vector<8x256xf32>
    %177 = arith.mulf %176, %64 : vector<8x256xf32>
    %178 = arith.addf %174, %177 : vector<8x256xf32>
    %179 = arith.addf %167, %178 : vector<8x256xf32>
    %c20 = arith.constant 20 : index
    %180 = memref.load %arg1[%c20] : memref<29xf32, #tpu.memory_space<smem>>
    %181 = vector.broadcast %180 : f32 to vector<8x256xf32>
    %182 = arith.mulf %181, %61 : vector<8x256xf32>
    %c23 = arith.constant 23 : index
    %183 = memref.load %arg1[%c23] : memref<29xf32, #tpu.memory_space<smem>>
    %184 = vector.broadcast %183 : f32 to vector<8x256xf32>
    %185 = arith.mulf %184, %0 : vector<8x256xf32>
    %186 = arith.addf %182, %185 : vector<8x256xf32>
    %c26 = arith.constant 26 : index
    %187 = memref.load %arg1[%c26] : memref<29xf32, #tpu.memory_space<smem>>
    %188 = vector.broadcast %187 : f32 to vector<8x256xf32>
    %189 = arith.mulf %188, %64 : vector<8x256xf32>
    %190 = arith.addf %186, %189 : vector<8x256xf32>
    %c255_i32_20 = arith.constant 255 : i32
    %191 = tpu.dynamic_rotate %190 by %c255_i32_20 dim 1 : vector<8x256xf32>, i32 -> vector<8x256xf32>
    %192 = vector.broadcast %33 : vector<1x256xf32> to vector<8x256xf32>
    %193 = arith.mulf %191, %192 : vector<8x256xf32>
    %194 = arith.addf %179, %193 : vector<8x256xf32>
    %c7_i32 = arith.constant 7 : i32
    %195 = tpu.dynamic_rotate %194 by %c7_i32 dim 0 : vector<8x256xf32>, i32 -> vector<8x256xf32>
    %196 = vector.broadcast %58 : vector<8x1xf32> to vector<8x256xf32>
    %197 = arith.mulf %195, %196 : vector<8x256xf32>
    %198 = arith.addf %153, %197 : vector<8x256xf32>
    %cst = arith.constant 0.000000e+00 : f32
    %199 = vector.broadcast %cst : f32 to vector<8x256xf32>
    %200 = arith.subf %199, %198 : vector<8x256xf32>
    %201 = math.exp %200 : vector<8x256xf32>
    %cst_21 = arith.constant 1.000000e+00 : f32
    %202 = vector.broadcast %cst_21 : f32 to vector<8x256xf32>
    %203 = arith.addf %202, %201 : vector<8x256xf32>
    %cst_22 = arith.constant 1.000000e+00 : f32
    %204 = vector.broadcast %cst_22 : f32 to vector<8x256xf32>
    %205 = arith.divf %204, %203 : vector<8x256xf32>
    %c28 = arith.constant 28 : index
    %206 = memref.load %arg1[%c28] : memref<29xf32, #tpu.memory_space<smem>>
    %207 = vector.broadcast %206 : f32 to vector<8x256xf32>
    %208 = arith.mulf %207, %205 : vector<8x256xf32>
    %209 = arith.mulf %0, %208 : vector<8x256xf32>
    %210 = arith.addf %209, %0 : vector<8x256xf32>
    %c0_23 = arith.constant 0 : index
    %c0_24 = arith.constant 0 : index
    %211 = vector.load %arg3[%c0_23, %c0_24] : memref<8x256xf32, #tpu.memory_space<vmem>>, vector<8x256xf32>
    tpu.vector_store %arg3[%c0_23, %c0_24], %210 {strides = array<i32>} : memref<8x256xf32, #tpu.memory_space<vmem>>, vector<8x256xf32>,
    return
  }
  func.func @transform_0(%arg0: i32) -> i32 {
    %c0_i32 = arith.constant 0 : i32
    %c0_i32_0 = arith.constant 0 : i32
    return %c0_i32 : i32
  }
  func.func @transform_1(%arg0: i32) -> (i32, i32) {
    %c0_i32 = arith.constant 0 : i32
    %c0_i32_0 = arith.constant 0 : i32
    return %arg0, %c0_i32 : i32, i32
  }
  func.func @transform_2(%arg0: i32) -> (i32, i32) {
    %c0_i32 = arith.constant 0 : i32
    %c0_i32_0 = arith.constant 0 : i32
    return %arg0, %c0_i32 : i32, i32
  }
}

</mosaic_0001>

<llo_original>
// kernel: tpu_custom_call.1
$region0: #{tpu_custom_call.1}
  #allocation0 [shape = 'u32[]', space=smem, size = 0x4, offset = 0x4, fixed_abs, tag = 'smem constant byte address 0x4 - core index']
  #allocation1 [shape = 'u32[144,128]{1,0:T(1,128)}', space=vmem, size = 0x12000, scoped, tag = 'internal scratch']
  %s0 = inlined_call_operand.hbm [shape: f32[29], index: 0, kind: input, shape index: {}]
  %s1 = inlined_call_operand.hbm [shape: f32[8,256], index: 1, kind: input, shape index: {}]
  %s2 = inlined_call_operand.hbm [shape: f32[8,256], index: 2, kind: output, shape index: {}]
  %s3 = sld [smem:[#allocation0]]
  $region26: #{tpu_custom_call.1} parent=0
    _
  %s5 = ssub.s32 1, %s3
  %s6 = scalar_select 0, %s5, %s3
  $region1: #{tpu_custom_call.1} parent=0
    #allocation2 [shape = 'u8[512]{0}', space=smem, size = 0x200, scoped, tag = 'input window, operand 0, single buffered']
    #allocation3 [shape = 's32[1]{0}', space=sflag, size = 0x4, scoped, tag = 'scoped memory for tpu_custom_call.1']
    #allocation4 [shape = 's32[1]{0}', space=sflag, size = 0x4, scoped, tag = 'scoped memory for tpu_custom_call.1']
    #allocation5 [shape = 's32[1]{0}', space=sflag, size = 0x4, scoped, tag = 'scoped memory for tpu_custom_call.1']
    #allocation6 [shape = 'u8[8192]{0}', space=vmem, size = 0x2000, scoped, tag = 'input window, operand 1, single buffered']
    #allocation7 [shape = 'u8[8192]{0}', space=vmem, size = 0x2000, scoped, tag = 'output window, operand 0, single buffered']
    %7 = vsyncpa [#allocation5], 0
    %8 = vsyncpa [#allocation3], 0
    %9 = vsyncpa [#allocation4], 0
    // Predicated region
    $region2: #{tpu_custom_call.1} parent=1 // pred_check
      _
    $region3: #{tpu_custom_call.1} parent=1 // pred_check_branch
      %11 = sbr.rel (0) target = $region5
    $region4: #{tpu_custom_call.1} parent=1 // pred_region
      %s13 = ssub.s32 16, 16
      %14 = vsyncadd [#allocation5], %s13
      %17 = dma.hbm_to_smem %s0, 16, [#allocation2], [#allocation5]
    $region5: #{tpu_custom_call.1} parent=1 // pred_fallthru
      _
    // Predicated region
    $region6: #{tpu_custom_call.1} parent=1 // pred_check
      _
    $region7: #{tpu_custom_call.1} parent=1 // pred_check_branch
      %19 = sbr.rel (0) target = $region9
    $region8: #{tpu_custom_call.1} parent=1 // pred_region
      %s21 = ssub.s32 256, 256
      %22 = vsyncadd [#allocation3], %s21
      %s24 = sshll.u32 [#allocation6], 4
      %s25 = int_to_ptr.vmem [resolvable:$true] %s24
      %27 = dma.hbm_to_vmem [thread:$0]  %s1, 256, %s25, [#allocation3]
    $region9: #{tpu_custom_call.1} parent=1 // pred_fallthru
      _
    // Predicated region
    $region10: #{tpu_custom_call.1} parent=1 // pred_check
      _
    $region11: #{tpu_custom_call.1} parent=1 // pred_check_branch
      %29 = sbr.rel (0) target = $region13
    $region12: #{tpu_custom_call.1} parent=1 // pred_region
      %30 = dma.done [#allocation5], 16
    $region13: #{tpu_custom_call.1} parent=1 // pred_fallthru
      _
    // Predicated region
    $region14: #{tpu_custom_call.1} parent=1 // pred_check
      _
    $region15: #{tpu_custom_call.1} parent=1 // pred_check_branch
      %32 = sbr.rel (0) target = $region17
    $region16: #{tpu_custom_call.1} parent=1 // pred_region
      %33 = dma.done [#allocation3], 256
    $region17: #{tpu_custom_call.1} parent=1 // pred_fallthru
      _
    %34 = sfence
    %v35 = vld [vmem:[#allocation6] sm:$0xff]
    %v36 = vld [vmem:[#allocation6 + $0x8] sm:$0xff]
    %v37 = vlaneseq
    %v38 = vand.u32 %v37, 127
    %v39 = vadd.s32 %v38, 128
    %vm40 = vcmp.lt.s32.totalorder %v38, 0
    %v41 = vsub.s32 0, %v38
    %v42 = vsel %vm40, %v41, %v38
    %v43 = vshrl.u32 %v42, 4
    %v44 = vand.u32 %v42, 15
    %v45 = vsub.s32 0, %v44
    %v46 = vsel %vm40, %v45, %v44
    %vm47 = vcmp.lt.s32.totalorder %v39, 0
    %v48 = vsub.s32 0, %v39
    %v49 = vsel %vm47, %v48, %v39
    %v50 = vshrl.u32 %v49, 4
    %v51 = vand.u32 %v49, 15
    %v52 = vsub.s32 0, %v51
    %v53 = vsel %vm47, %v52, %v51
    %vm54 = vcmp.ne.s32.totalorder %v46, 0
    %vm55 = vcmp.ne.s32.totalorder %v53, 0
    %vm56 = vcmp.lt.s32.totalorder %v46, 0
    %vm57 = vcmp.lt.s32.totalorder %v53, 0
    %vm58 = vmand %vm56, %vm54
    %vm59 = vmand %vm57, %vm55
    %v60 = vadd.s32 %v46, 16
    %v61 = vadd.s32 %v53, 16
    %v62 = vsel %vm58, %v60, %v46
    %v63 = vsel %vm59, %v61, %v53
    %vm64 = vcmp.ge.s32.totalorder %v38, 16
    %vm65 = vcmp.ge.s32.totalorder %v39, 16
    %v66 = vsel %vm64, 1, 0
    %v67 = vsel %vm65, 1, 0
    %v68 = vcvt.s32.f32 %v66
    %v69 = vcvt.s32.f32 %v67
    %vm70 = vcmp.lt.s32.totalorder %v38, 240
    %vm71 = vcmp.lt.s32.totalorder %v39, 240
    %v72 = vsel %vm70, 1, 0
    %v73 = vsel %vm71, 1, 0
    %v74 = vcvt.s32.f32 %v72
    %v75 = vcvt.s32.f32 %v73
    %vm76 = vcmp.ge.s32.totalorder %v62, 1
    %vm77 = vcmp.ge.s32.totalorder %v63, 1
    %v78 = vsel %vm76, 1, 0
    %v79 = vsel %vm77, 1, 0
    %v80 = vcvt.s32.f32 %v78
    %v81 = vcvt.s32.f32 %v79
    %vm82 = vcmp.le.s32.totalorder %v62, 14
    %vm83 = vcmp.le.s32.totalorder %v63, 14
    %v84 = vsel %vm82, 1, 0
    %v85 = vsel %vm83, 1, 0
    %v86 = vcvt.s32.f32 %v84
    %v87 = vcvt.s32.f32 %v85
    %v88 = vlaneseq
    %v89 = vshrl.u32 %v88, 7
    %vm90 = vcmp.lt.s32.totalorder %v89, 0
    %v91 = vsub.s32 0, %v89
    %v92 = vsel %vm90, %v91, %v89
    %v93 = vshrl.u32 %v92, 2
    %v94 = vand.u32 %v92, 3
    %v95 = vsub.s32 0, %v94
    %v96 = vsel %vm90, %v95, %v94
    %vm97 = vcmp.ne.s32.totalorder %v96, 0
    %vm98 = vcmp.lt.s32.totalorder %v96, 0
    %vm99 = vmand %vm98, %vm97
    %v100 = vadd.s32 %v96, 4
    %v101 = vsel %vm99, %v100, %v96
    %vm102 = vcmp.ge.s32.totalorder %v101, 1
    %v103 = vsel %vm102, 1, 0
    %v104 = vcvt.s32.f32 %v103
    %vm105 = vcmp.le.s32.totalorder %v101, 2
    %v106 = vsel %vm105, 1, 0
    %v107 = vcvt.s32.f32 %v106
    %108 = vrot.lane.b32.xlu0 %v35, 16
    %v109 = vpop.permute.xlu0 %108
    %110 = vrot.lane.b32.xlu0 %v36, 16
    %v111 = vpop.permute.xlu0 %110
    %vm112 = vcmp.lt.s32.totalorder %v38, 16
    %v113 = vsel %vm112, %v109, %v111
    %v114 = vsel %vm112, %v111, %v109
    %v115 = vmul.f32 %v114, %v68
    %v116 = vmul.f32 %v113, %v69
    %117 = vrot.lane.b32.xlu0 %v35, 112
    %v118 = vpop.permute.xlu0 %117
    %119 = vrot.lane.b32.xlu0 %v36, 112
    %v120 = vpop.permute.xlu0 %119
    %vm121 = vcmp.lt.s32.totalorder %v38, 112
    %v122 = vsel %vm121, %v118, %v120
    %v123 = vsel %vm121, %v120, %v118
    %v124 = vmul.f32 %v122, %v74
    %v125 = vmul.f32 %v123, %v75
    %s126 = sld [smem:[#allocation2 + $0x1b]]
    %v127 = vstv %s126
    %s128 = sld [smem:[#allocation2]]
    %v129 = vstv %s128
    %v130 = vmul.f32 %v129, %v115
    %v131 = vmul.f32 %v129, %v116
    %s132 = sld [smem:[#allocation2 + $0x3]]
    %v133 = vstv %s132
    %v134 = vmul.f32 %v133, %v35
    %v135 = vmul.f32 %v133, %v36
    %v136 = vadd.f32 %v130, %v134
    %v137 = vadd.f32 %v131, %v135
    %s138 = sld [smem:[#allocation2 + $0x6]]
    %v139 = vstv %s138
    %v140 = vmul.f32 %v139, %v124
    %v141 = vmul.f32 %v139, %v125
    %v142 = vadd.f32 %v136, %v140
    %v143 = vadd.f32 %v137, %v141
    %144 = vrot.lane.b32.xlu0 %v142, 1
    %v145 = vpop.permute.xlu0 %144
    %146 = vrot.lane.b32.xlu0 %v143, 1
    %v147 = vpop.permute.xlu0 %146
    %vm148 = vcmp.lt.s32.totalorder %v38, 1
    %v149 = vsel %vm148, %v145, %v147
    %v150 = vsel %vm148, %v147, %v145
    %v151 = vmul.f32 %v150, %v80
    %v152 = vmul.f32 %v149, %v81
    %s153 = sld [smem:[#allocation2 + $0x1]]
    %v154 = vstv %s153
    %v155 = vmul.f32 %v154, %v115
    %v156 = vmul.f32 %v154, %v116
    %s157 = sld [smem:[#allocation2 + $0x4]]
    %v158 = vstv %s157
    %v159 = vmul.f32 %v158, %v35
    %v160 = vmul.f32 %v158, %v36
    %v161 = vadd.f32 %v155, %v159
    %v162 = vadd.f32 %v156, %v160
    %s163 = sld [smem:[#allocation2 + $0x7]]
    %v164 = vstv %s163
    %v165 = vmul.f32 %v164, %v124
    %v166 = vmul.f32 %v164, %v125
    %v167 = vadd.f32 %v161, %v165
    %v168 = vadd.f32 %v162, %v166
    %v169 = vadd.f32 %v151, %v167
    %v170 = vadd.f32 %v152, %v168
    %s171 = sld [smem:[#allocation2 + $0x2]]
    %v172 = vstv %s171
    %v173 = vmul.f32 %v172, %v115
    %v174 = vmul.f32 %v172, %v116
    %s175 = sld [smem:[#allocation2 + $0x5]]
    %v176 = vstv %s175
    %v177 = vmul.f32 %v176, %v35
    %v178 = vmul.f32 %v176, %v36
    %v179 = vadd.f32 %v173, %v177
    %v180 = vadd.f32 %v174, %v178
    %s181 = sld [smem:[#allocation2 + $0x8]]
    %v182 = vstv %s181
    %v183 = vmul.f32 %v182, %v124
    %v184 = vmul.f32 %v182, %v125
    %v185 = vadd.f32 %v179, %v183
    %v186 = vadd.f32 %v180, %v184
    %187 = vrot.lane.b32.xlu0 %v185, 127
    %v188 = vpop.permute.xlu0 %187
    %189 = vrot.lane.b32.xlu0 %v186, 127
    %v190 = vpop.permute.xlu0 %189
    %vm191 = vcmp.lt.s32.totalorder %v38, 127
    %v192 = vsel %vm191, %v188, %v190
    %v193 = vsel %vm191, %v190, %v188
    %v194 = vmul.f32 %v192, %v86
    %v195 = vmul.f32 %v193, %v87
    %v196 = vadd.f32 %v169, %v194
    %v197 = vadd.f32 %v170, %v195
    %v198 = vrot.slane %v196, 7
    %v199 = vrot.slane %v197, 7
    %v200 = vmul.f32 %v198, %v104
    %v201 = vmul.f32 %v199, %v104
    %v202 = vadd.f32 %v127, %v200
    %v203 = vadd.f32 %v127, %v201
    %s204 = sld [smem:[#allocation2 + $0x9]]
    %v205 = vstv %s204
    %v206 = vmul.f32 %v205, %v115
    %v207 = vmul.f32 %v205, %v116
    %s208 = sld [smem:[#allocation2 + $0xc]]
    %v209 = vstv %s208
    %v210 = vmul.f32 %v209, %v35
    %v211 = vmul.f32 %v209, %v36
    %v212 = vadd.f32 %v206, %v210
    %v213 = vadd.f32 %v207, %v211
    %s214 = sld [smem:[#allocation2 + $0xf]]
    %v215 = vstv %s214
    %v216 = vmul.f32 %v215, %v124
    %v217 = vmul.f32 %v215, %v125
    %v218 = vadd.f32 %v212, %v216
    %v219 = vadd.f32 %v213, %v217
    %220 = vrot.lane.b32.xlu0 %v218, 1
    %v221 = vpop.permute.xlu0 %220
    %222 = vrot.lane.b32.xlu0 %v219, 1
    %v223 = vpop.permute.xlu0 %222
    %v224 = vsel %vm148, %v221, %v223
    %v225 = vsel %vm148, %v223, %v221
    %v226 = vmul.f32 %v225, %v80
    %v227 = vmul.f32 %v224, %v81
    %s228 = sld [smem:[#allocation2 + $0xa]]
    %v229 = vstv %s228
    %v230 = vmul.f32 %v229, %v115
    %v231 = vmul.f32 %v229, %v116
    %s232 = sld [smem:[#allocation2 + $0xd]]
    %v233 = vstv %s232
    %v234 = vmul.f32 %v233, %v35
    %v235 = vmul.f32 %v233, %v36
    %v236 = vadd.f32 %v230, %v234
    %v237 = vadd.f32 %v231, %v235
    %s238 = sld [smem:[#allocation2 + $0x10]]
    %v239 = vstv %s238
    %v240 = vmul.f32 %v239, %v124
    %v241 = vmul.f32 %v239, %v125
    %v242 = vadd.f32 %v236, %v240
    %v243 = vadd.f32 %v237, %v241
    %v244 = vadd.f32 %v226, %v242
    %v245 = vadd.f32 %v227, %v243
    %s246 = sld [smem:[#allocation2 + $0xb]]
    %v247 = vstv %s246
    %v248 = vmul.f32 %v247, %v115
    %v249 = vmul.f32 %v247, %v116
    %s250 = sld [smem:[#allocation2 + $0xe]]
    %v251 = vstv %s250
    %v252 = vmul.f32 %v251, %v35
    %v253 = vmul.f32 %v251, %v36
    %v254 = vadd.f32 %v248, %v252
    %v255 = vadd.f32 %v249, %v253
    %s256 = sld [smem:[#allocation2 + $0x11]]
    %v257 = vstv %s256
    %v258 = vmul.f32 %v257, %v124
    %v259 = vmul.f32 %v257, %v125
    %v260 = vadd.f32 %v254, %v258
    %v261 = vadd.f32 %v255, %v259
    %262 = vrot.lane.b32.xlu0 %v260, 127
    %v263 = vpop.permute.xlu0 %262
    %264 = vrot.lane.b32.xlu0 %v261, 127
    %v265 = vpop.permute.xlu0 %264
    %v266 = vsel %vm191, %v263, %v265
    %v267 = vsel %vm191, %v265, %v263
    %v268 = vmul.f32 %v266, %v86
    %v269 = vmul.f32 %v267, %v87
    %v270 = vadd.f32 %v244, %v268
    %v271 = vadd.f32 %v245, %v269
    %v272 = vadd.f32 %v202, %v270
    %v273 = vadd.f32 %v203, %v271
    %s274 = sld [smem:[#allocation2 + $0x12]]
    %v275 = vstv %s274
    %v276 = vmul.f32 %v275, %v115
    %v277 = vmul.f32 %v275, %v116
    %s278 = sld [smem:[#allocation2 + $0x15]]
    %v279 = vstv %s278
    %v280 = vmul.f32 %v279, %v35
    %v281 = vmul.f32 %v279, %v36
    %v282 = vadd.f32 %v276, %v280
    %v283 = vadd.f32 %v277, %v281
    %s284 = sld [smem:[#allocation2 + $0x18]]
    %v285 = vstv %s284
    %v286 = vmul.f32 %v285, %v124
    %v287 = vmul.f32 %v285, %v125
    %v288 = vadd.f32 %v282, %v286
    %v289 = vadd.f32 %v283, %v287
    %290 = vrot.lane.b32.xlu0 %v288, 1
    %v291 = vpop.permute.xlu0 %290
    %292 = vrot.lane.b32.xlu0 %v289, 1
    %v293 = vpop.permute.xlu0 %292
    %v294 = vsel %vm148, %v291, %v293
    %v295 = vsel %vm148, %v293, %v291
    %v296 = vmul.f32 %v295, %v80
    %v297 = vmul.f32 %v294, %v81
    %s298 = sld [smem:[#allocation2 + $0x13]]
    %v299 = vstv %s298
    %v300 = vmul.f32 %v299, %v115
    %v301 = vmul.f32 %v299, %v116
    %s302 = sld [smem:[#allocation2 + $0x16]]
    %v303 = vstv %s302
    %v304 = vmul.f32 %v303, %v35
    %v305 = vmul.f32 %v303, %v36
    %v306 = vadd.f32 %v300, %v304
    %v307 = vadd.f32 %v301, %v305
    %s308 = sld [smem:[#allocation2 + $0x19]]
    %v309 = vstv %s308
    %v310 = vmul.f32 %v309, %v124
    %v311 = vmul.f32 %v309, %v125
    %v312 = vadd.f32 %v306, %v310
    %v313 = vadd.f32 %v307, %v311
    %v314 = vadd.f32 %v296, %v312
    %v315 = vadd.f32 %v297, %v313
    %s316 = sld [smem:[#allocation2 + $0x14]]
    %v317 = vstv %s316
    %v318 = vmul.f32 %v317, %v115
    %v319 = vmul.f32 %v317, %v116
    %s320 = sld [smem:[#allocation2 + $0x17]]
    %v321 = vstv %s320
    %v322 = vmul.f32 %v321, %v35
    %v323 = vmul.f32 %v321, %v36
    %v324 = vadd.f32 %v318, %v322
    %v325 = vadd.f32 %v319, %v323
    %s326 = sld [smem:[#allocation2 + $0x1a]]
    %v327 = vstv %s326
    %v328 = vmul.f32 %v327, %v124
    %v329 = vmul.f32 %v327, %v125
    %v330 = vadd.f32 %v324, %v328
    %v331 = vadd.f32 %v325, %v329
    %332 = vrot.lane.b32.xlu0 %v330, 127
    %v333 = vpop.permute.xlu0 %332
    %334 = vrot.lane.b32.xlu0 %v331, 127
    %v335 = vpop.permute.xlu0 %334
    %v336 = vsel %vm191, %v333, %v335
    %v337 = vsel %vm191, %v335, %v333
    %v338 = vmul.f32 %v336, %v86
    %v339 = vmul.f32 %v337, %v87
    %v340 = vadd.f32 %v314, %v338
    %v341 = vadd.f32 %v315, %v339
    %v342 = vrot.slane %v340, 1
    %v343 = vrot.slane %v341, 1
    %v344 = vmul.f32 %v342, %v107
    %v345 = vmul.f32 %v343, %v107
    %v346 = vadd.f32 %v272, %v344
    %v347 = vadd.f32 %v273, %v345
    %v348 = vsub.f32 0.0, %v346
    %v349 = vsub.f32 0.0, %v347
    %v350 = vmul.f32 %v348, 1.442695
    %v351 = vpow.pop %v350
    %v352 = vmul.f32 %v349, 1.442695
    %v353 = vpow.pop %v352
    %v354 = vadd.f32 %v351, 1.0
    %v355 = vadd.f32 %v353, 1.0
    %v356 = vrcp.pop %v354
    %v357 = vmul.f32 1.0, %v356
    %v358 = vrcp.pop %v355
    %v359 = vmul.f32 1.0, %v358
    %s360 = sld [smem:[#allocation2 + $0x1c]]
    %v361 = vstv %s360
    %v362 = vmul.f32 %v361, %v357
    %v363 = vmul.f32 %v361, %v359
    %v364 = vmul.f32 %v35, %v362
    %v365 = vmul.f32 %v36, %v363
    %v366 = vadd.f32 %v364, %v35
    %v367 = vadd.f32 %v365, %v36
    %368 = vst [vmem:[#allocation7] sm:$0xff] %v366
    %369 = vst [vmem:[#allocation7 + $0x8] sm:$0xff] %v367
    // Predicated region
    $region18: #{tpu_custom_call.1} parent=1 // pred_check
      _
    $region19: #{tpu_custom_call.1} parent=1 // pred_check_branch
      %371 = sbr.rel (0) target = $region21
    $region20: #{tpu_custom_call.1} parent=1 // pred_region
      %s373 = ssub.s32 256, 256
      %374 = vsyncadd [#allocation4], %s373
      %s376 = sshll.u32 [#allocation7], 4
      %s377 = int_to_ptr.vmem [resolvable:$true] %s376
      %379 = dma.vmem_to_hbm [thread:$0]  %s377, 256, %s2, [#allocation4]
    $region21: #{tpu_custom_call.1} parent=1 // pred_fallthru
      _
    // Predicated region
    $region22: #{tpu_custom_call.1} parent=1 // pred_check
      _
    $region23: #{tpu_custom_call.1} parent=1 // pred_check_branch
      %381 = sbr.rel (0) target = $region25
    $region24: #{tpu_custom_call.1} parent=1 // pred_region
      %382 = dma.done [#allocation4], 256
    $region25: #{tpu_custom_call.1} parent=1 // pred_fallthru
      _
    %383 = vsyncpa [#allocation3], 1
    %384 = vsyncpa [#allocation4], 1
    %385 = vsyncpa [#allocation5], 1

</llo_original>
